<compile_context>
chip_gen: v7x
topology: tpu7x:2x2x1
jax: 0.10.0
libtpu: 0.0.40
codegen_flags: <defaults>
</compile_context>

<pallas_src>
import jax
import jax.numpy as jnp
from jax.experimental import pallas as pl
from jax.experimental.pallas import tpu as pltpu


def _ipcae_cls_kernel(x_ref, W_ref, psiT_ref,
                      wqkv_ref, bqkv_ref, bo_ref,
                      u_ref, inv_temp_ref,
                      fc1wb_ref, fc1bb_ref, fc2wb_ref, fc2bb_ref,
                      out_ref):
    f32 = jnp.float32
    W = W_ref[...]                                    # (D_in, E)
    E = W.shape[1]
    K = psiT_ref.shape[1]
    B = x_ref.shape[0]

    # ---- fused single-head self-attention (1 projection matmul) ----
    # wqkv = [wq/sqrt(E) | wk | wv @ wo]; bqkv = [bq/sqrt(E) | bk | bv @ wo].
    qkv = jnp.dot(W, wqkv_ref[...], preferred_element_type=f32) + bqkv_ref[...]
    q = qkv[:, :E]
    k = qkv[:, E:2 * E]
    v = qkv[:, 2 * E:]                                 # value with wo folded in
    scores = jnp.dot(q, k.T, preferred_element_type=f32)           # (D_in, D_in)
    scores = scores - jnp.max(scores, axis=-1, keepdims=True)
    p = jnp.exp(scores)
    p = p * (1.0 / jnp.sum(p, axis=-1, keepdims=True))
    att = jnp.dot(p, v, preferred_element_type=f32) + bo_ref[...]  # (D_in, E)
    W_att = att + W                                                # residual

    # ---- logits (identical for every batch row): (D_in, K) ----
    logits = jnp.dot(W_att, psiT_ref[...], preferred_element_type=f32)

    # ---- Gumbel softmax over the batch axis, lane-packed as (D_in, B*K) ----
    inv_temp = inv_temp_ref[0]
    g = -jnp.log(-jnp.log(u_ref[...] + 1e-10) + 1e-10)             # one EUP pass
    z = (jnp.tile(logits, (1, B)) + g) * inv_temp                  # (D_in, B*K)
    # max / sum over the B lane-blocks (only 2 accumulators live, no B-sized lists)
    m = z[:, :K]
    for i in range(1, B):
        m = jnp.maximum(m, z[:, i * K:(i + 1) * K])
    e = jnp.exp(z - jnp.tile(m, (1, B)))                           # one EUP pass
    s = e[:, :K]
    for i in range(1, B):
        s = s + e[:, i * K:(i + 1) * K]
    # exact reciprocal (approx vrcp could strain the 1e-4 tolerance)
    y = e * jnp.tile(1.0 / s, (1, B))                              # (D_in, B*K)

    # ---- feature selection for all (i, j) pairs in ONE matmul ----
    # sel[j, i*K + k] = sum_d x[j, d] * y_i[d, k]  (== torch sel[i, j, k])
    sel = jnp.dot(x_ref[...], y, preferred_element_type=f32)       # (B, B*K)

    # ---- block-diagonal MLP classifier: one fc1, one ReLU, one fc2, one store ----
    h = jnp.dot(sel, fc1wb_ref[...], preferred_element_type=f32) + fc1bb_ref[...]
    h = jnp.maximum(h, 0.0)
    out_ref[...] = (jnp.dot(h, fc2wb_ref[...], preferred_element_type=f32)
                    + fc2bb_ref[...])                              # (B, B*O)


def _block_diag_repeat(w, n):
    """Block-diagonal matrix with n copies of w (pure jnp, no scipy)."""
    return jnp.kron(jnp.eye(n, dtype=w.dtype), w)


def ipcae_classifier_forward(x, params, u, temperature):
    """Whole forward pass in a single Pallas kernel (all-VMEM, no grid)."""
    B, D_in = x.shape
    E = params["W"].shape[1]
    K = params["psi"].shape[0]
    O = params["fc2_w"].shape[1]

    scale = 1.0 / jnp.sqrt(jnp.float32(E))
    # Fold 1/sqrt(E) into the q projection and wo into the v projection.
    wqkv = jnp.concatenate(
        [params["wq"] * scale, params["wk"], params["wv"] @ params["wo"]], axis=1)
    bqkv = jnp.concatenate(
        [params["bq"] * scale, params["bk"], params["bv"] @ params["wo"]], axis=1)
    psi_T = params["psi"].T                                          # (E, K)

    # u is generated like torch.rand_like(logits) with shape (B, D_in, K);
    # lane-pack it to (D_in, B*K) so the whole Gumbel/softmax runs vectorized.
    u_packed = jnp.transpose(u, (1, 0, 2)).reshape(D_in, B * K)

    # Block-diagonal classifier weights so all B selections share one matmul.
    fc1w_blk = _block_diag_repeat(params["fc1_w"], B)                # (B*K, B*H)
    fc2w_blk = _block_diag_repeat(params["fc2_w"], B)                # (B*H, B*O)
    fc1b_blk = jnp.tile(params["fc1_b"], (1, B))                     # (1, B*H)
    fc2b_blk = jnp.tile(params["fc2_b"], (1, B))                     # (1, B*O)

    inv_temp = jnp.full((1,), 1.0 / temperature, jnp.float32)

    inputs = (x, params["W"], psi_T, wqkv, bqkv, params["bo"],
              u_packed, inv_temp,
              fc1w_blk, fc1b_blk, fc2w_blk, fc2b_blk)

    vmem = pl.BlockSpec(memory_space=pltpu.MemorySpace.VMEM)
    smem = pl.BlockSpec(memory_space=pltpu.MemorySpace.SMEM)
    in_specs = [vmem] * len(inputs)
    in_specs[7] = smem  # 1/temperature scalar lives in SMEM

    out_packed = pl.pallas_call(
        _ipcae_cls_kernel,
        out_shape=jax.ShapeDtypeStruct((B, B * O), jnp.float32),
        in_specs=in_specs,
        out_specs=vmem,
    )(*inputs)

    # out_packed[j, i*O + o] == out[i, j, o]
    return out_packed.reshape(B, B, O).transpose(1, 0, 2)


def init_params(key, input_dim, k_select, hidden_dim, output_dim, embed_dim):
    ks = jax.random.split(key, 11)
    n = jax.random.normal
    s_attn = 1.0 / jnp.sqrt(jnp.float32(embed_dim))
    p = {
        # IndirectConcreteLayerWithNNAttention params (torch.randn init)
        "psi": n(ks[0], (k_select, embed_dim), jnp.float32),
        "W":   n(ks[1], (input_dim, embed_dim), jnp.float32),
        "b":   n(ks[2], (input_dim,), jnp.float32),  # present in module, unused in forward
        # nn.MultiheadAttention(embed_dim, num_heads=1) params (pre-transposed to (in, out))
        "wq": n(ks[3], (embed_dim, embed_dim), jnp.float32) * s_attn,
        "wk": n(ks[4], (embed_dim, embed_dim), jnp.float32) * s_attn,
        "wv": n(ks[5], (embed_dim, embed_dim), jnp.float32) * s_attn,
        "wo": n(ks[6], (embed_dim, embed_dim), jnp.float32) * s_attn,
        "bq": jnp.zeros((1, embed_dim), jnp.float32),
        "bk": jnp.zeros((1, embed_dim), jnp.float32),
        "bv": jnp.zeros((1, embed_dim), jnp.float32),
        "bo": jnp.zeros((1, embed_dim), jnp.float32),
        # MLPClassifier params (pre-transposed to (in, out))
        "fc1_w": n(ks[7], (k_select, hidden_dim), jnp.float32) / jnp.sqrt(jnp.float32(k_select)),
        "fc1_b": n(ks[8], (1, hidden_dim), jnp.float32) * 0.1,
        "fc2_w": n(ks[9], (hidden_dim, output_dim), jnp.float32) / jnp.sqrt(jnp.float32(hidden_dim)),
        "fc2_b": n(ks[10], (1, output_dim), jnp.float32) * 0.1,
    }
    return p


def reference_forward(x, p, u, temperature):
    """Pure-JAX reference replicating the torch semantics (training path)."""
    W = p["W"]
    E = W.shape[1]
    q = W @ p["wq"] + p["bq"]
    k = W @ p["wk"] + p["bk"]
    v = W @ p["wv"] + p["bv"]
    scores = (q / jnp.sqrt(jnp.float32(E))) @ k.T
    probs = jax.nn.softmax(scores, axis=-1)
    att = (probs @ v) @ p["wo"] + p["bo"]
    W_att = att + W
    logits = W_att @ p["psi"].T                                   # (D_in, K), same per batch
    g = -jnp.log(-jnp.log(u + 1e-10) + 1e-10)                      # (B, D_in, K)
    y = jax.nn.softmax((logits[None, :, :] + g) / temperature, axis=0)
    sel = jnp.einsum('jd,idk->ijk', x, y)                          # torch.matmul(x, y) -> (B, B, K)
    h = jnp.maximum(jnp.einsum('ijk,kh->ijh', sel, p["fc1_w"]) + p["fc1_b"], 0.0)
    return jnp.einsum('ijh,ho->ijo', h, p["fc2_w"]) + p["fc2_b"]


if __name__ == "__main__":
    B = 4           # batch
    D_in = 16       # input_dim
    K = 8           # k_feature_select
    H = 32          # hidden_dim_cls
    O = 4           # output_dim (classes)
    E = 32          # embedding_dim

    key = jax.random.PRNGKey(0)
    kx, ku, kp = jax.random.split(key, 3)
    x = jax.random.normal(kx, (B, D_in), jnp.float32)
    u = jax.random.uniform(ku, (B, D_in, K), jnp.float32)          # torch.rand_like(logits)
    params = init_params(kp, D_in, K, H, O, E)
    temperature = 1.0

    out = ipcae_classifier_forward(x, params, u, temperature)
    out = jax.block_until_ready(out)

    ref = reference_forward(x, params, u, temperature)
    assert out.shape == (B, B, O), out.shape
    if not bool(jnp.allclose(out, ref, rtol=1e-4, atol=1e-4)):
        raise AssertionError("Pallas kernel does not match pure-JAX reference")

    print("KERNEL_OK")
</pallas_src>

<mosaic_0001>
module attributes {stable_mosaic.version = 11 : i64} {
  func.func @_ipcae_cls_kernel(%arg0: memref<4x16xf32, #tpu.memory_space<vmem>>, %arg1: memref<16x32xf32, #tpu.memory_space<vmem>>, %arg2: memref<32x8xf32, #tpu.memory_space<vmem>>, %arg3: memref<32x96xf32, #tpu.memory_space<vmem>>, %arg4: memref<1x96xf32, #tpu.memory_space<vmem>>, %arg5: memref<1x32xf32, #tpu.memory_space<vmem>>, %arg6: memref<16x32xf32, #tpu.memory_space<vmem>>, %arg7: memref<1xf32, #tpu.memory_space<smem>>, %arg8: memref<32x128xf32, #tpu.memory_space<vmem>>, %arg9: memref<1x128xf32, #tpu.memory_space<vmem>>, %arg10: memref<128x16xf32, #tpu.memory_space<vmem>>, %arg11: memref<1x16xf32, #tpu.memory_space<vmem>>, %arg12: memref<4x16xf32, #tpu.memory_space<vmem>>) attributes {dimension_semantics = [], scalar_prefetch = 0 : i64, scratch_operands = 0 : i64, tpu.core_type = #tpu.core_type<tc>} {
    %c0 = arith.constant 0 : index
    %c0_0 = arith.constant 0 : index
    %0 = vector.load %arg1[%c0, %c0_0] : memref<16x32xf32, #tpu.memory_space<vmem>>, vector<16x32xf32>
    %c0_1 = arith.constant 0 : index
    %c0_2 = arith.constant 0 : index
    %1 = vector.load %arg3[%c0_1, %c0_2] : memref<32x96xf32, #tpu.memory_space<vmem>>, vector<32x96xf32>
    %cst = arith.constant dense<0.000000e+00> : vector<16x96xf32>
    %2 = tpu.matmul %0, %1, %cst {dimension_numbers = #tpu.dot_dimension_numbers<[1], [0], [0], [1], [0, 0, 1, 1], [], []>} : vector<16x32xf32>, vector<32x96xf32>, vector<16x96xf32> -> vector<16x96xf32>
    %c0_3 = arith.constant 0 : index
    %c0_4 = arith.constant 0 : index
    %3 = vector.load %arg4[%c0_3, %c0_4] : memref<1x96xf32, #tpu.memory_space<vmem>>, vector<1x96xf32>
    %4 = vector.broadcast %3 : vector<1x96xf32> to vector<16x96xf32>
    %5 = arith.addf %2, %4 : vector<16x96xf32>
    %6 = vector.extract_strided_slice %5 {offsets = [0, 0], sizes = [16, 32], strides = [1, 1]} : vector<16x96xf32> to vector<16x32xf32>
    %7 = vector.extract_strided_slice %5 {offsets = [0, 32], sizes = [16, 32], strides = [1, 1]} : vector<16x96xf32> to vector<16x32xf32>
    %8 = vector.extract_strided_slice %5 {offsets = [0, 64], sizes = [16, 32], strides = [1, 1]} : vector<16x96xf32> to vector<16x32xf32>
    %9 = tpu.transpose %7, [1, 0] : vector<16x32xf32> -> vector<32x16xf32>
    %cst_5 = arith.constant dense<0.000000e+00> : vector<16x16xf32>
    %10 = tpu.matmul %6, %9, %cst_5 {dimension_numbers = #tpu.dot_dimension_numbers<[1], [0], [0], [1], [0, 0, 1, 1], [], []>} : vector<16x32xf32>, vector<32x16xf32>, vector<16x16xf32> -> vector<16x16xf32>
    %cst_6 = arith.constant dense<0xFF800000> : vector<16xf32>
    %11 = vector.multi_reduction <maximumf>, %10, %cst_6 [1] : vector<16x16xf32> to vector<16xf32>
    %12 = vector.shape_cast %11 : vector<16xf32> to vector<16x1xf32>
    %13 = vector.broadcast %12 : vector<16x1xf32> to vector<16x16xf32>
    %14 = arith.subf %10, %13 : vector<16x16xf32>
    %15 = math.exp %14 : vector<16x16xf32>
    %cst_7 = arith.constant dense<0.000000e+00> : vector<16xf32>
    %16 = vector.multi_reduction <add>, %15, %cst_7 [1] : vector<16x16xf32> to vector<16xf32>
    %17 = vector.shape_cast %16 : vector<16xf32> to vector<16x1xf32>
    %cst_8 = arith.constant 1.000000e+00 : f32
    %18 = vector.broadcast %cst_8 : f32 to vector<16x1xf32>
    %19 = arith.divf %18, %17 : vector<16x1xf32>
    %20 = vector.broadcast %19 : vector<16x1xf32> to vector<16x16xf32>
    %21 = arith.mulf %15, %20 : vector<16x16xf32>
    %cst_9 = arith.constant dense<0.000000e+00> : vector<16x32xf32>
    %22 = tpu.matmul %21, %8, %cst_9 {dimension_numbers = #tpu.dot_dimension_numbers<[1], [0], [0], [1], [0, 0, 1, 1], [], []>} : vector<16x16xf32>, vector<16x32xf32>, vector<16x32xf32> -> vector<16x32xf32>
    %c0_10 = arith.constant 0 : index
    %c0_11 = arith.constant 0 : index
    %23 = vector.load %arg5[%c0_10, %c0_11] : memref<1x32xf32, #tpu.memory_space<vmem>>, vector<1x32xf32>
    %24 = vector.broadcast %23 : vector<1x32xf32> to vector<16x32xf32>
    %25 = arith.addf %22, %24 : vector<16x32xf32>
    %26 = arith.addf %25, %0 : vector<16x32xf32>
    %c0_12 = arith.constant 0 : index
    %c0_13 = arith.constant 0 : index
    %27 = vector.load %arg2[%c0_12, %c0_13] : memref<32x8xf32, #tpu.memory_space<vmem>>, vector<32x8xf32>
    %cst_14 = arith.constant dense<0.000000e+00> : vector<16x8xf32>
    %28 = tpu.matmul %26, %27, %cst_14 {dimension_numbers = #tpu.dot_dimension_numbers<[1], [0], [0], [1], [0, 0, 1, 1], [], []>} : vector<16x32xf32>, vector<32x8xf32>, vector<16x8xf32> -> vector<16x8xf32>
    %c0_15 = arith.constant 0 : index
    %29 = memref.load %arg7[%c0_15] : memref<1xf32, #tpu.memory_space<smem>>
    %c0_16 = arith.constant 0 : index
    %c0_17 = arith.constant 0 : index
    %30 = vector.load %arg6[%c0_16, %c0_17] : memref<16x32xf32, #tpu.memory_space<vmem>>, vector<16x32xf32>
    %cst_18 = arith.constant 1.000000e-10 : f32
    %31 = vector.broadcast %cst_18 : f32 to vector<16x32xf32>
    %32 = arith.addf %30, %31 : vector<16x32xf32>
    %33 = math.log %32 : vector<16x32xf32>
    %cst_19 = arith.constant 0.000000e+00 : f32
    %34 = vector.broadcast %cst_19 : f32 to vector<16x32xf32>
    %35 = arith.subf %34, %33 : vector<16x32xf32>
    %cst_20 = arith.constant 1.000000e-10 : f32
    %36 = vector.broadcast %cst_20 : f32 to vector<16x32xf32>
    %37 = arith.addf %35, %36 : vector<16x32xf32>
    %38 = math.log %37 : vector<16x32xf32>
    %cst_21 = arith.constant 0.000000e+00 : f32
    %39 = vector.broadcast %cst_21 : f32 to vector<16x32xf32>
    %40 = arith.subf %39, %38 : vector<16x32xf32>
    %41 = tpu.concatenate %28, %28, %28, %28 in 1 : vector<16x8xf32>, vector<16x8xf32>, vector<16x8xf32>, vector<16x8xf32> -> vector<16x32xf32>
    %42 = arith.addf %41, %40 : vector<16x32xf32>
    %43 = vector.broadcast %29 : f32 to vector<16x32xf32>
    %44 = arith.mulf %42, %43 : vector<16x32xf32>
    %45 = vector.extract_strided_slice %44 {offsets = [0, 0], sizes = [16, 8], strides = [1, 1]} : vector<16x32xf32> to vector<16x8xf32>
    %46 = vector.extract_strided_slice %44 {offsets = [0, 8], sizes = [16, 8], strides = [1, 1]} : vector<16x32xf32> to vector<16x8xf32>
    %47 = arith.maximumf %45, %46 : vector<16x8xf32>
    %48 = vector.extract_strided_slice %44 {offsets = [0, 16], sizes = [16, 8], strides = [1, 1]} : vector<16x32xf32> to vector<16x8xf32>
    %49 = arith.maximumf %47, %48 : vector<16x8xf32>
    %50 = vector.extract_strided_slice %44 {offsets = [0, 24], sizes = [16, 8], strides = [1, 1]} : vector<16x32xf32> to vector<16x8xf32>
    %51 = arith.maximumf %49, %50 : vector<16x8xf32>
    %52 = tpu.concatenate %51, %51, %51, %51 in 1 : vector<16x8xf32>, vector<16x8xf32>, vector<16x8xf32>, vector<16x8xf32> -> vector<16x32xf32>
    %53 = arith.subf %44, %52 : vector<16x32xf32>
    %54 = math.exp %53 : vector<16x32xf32>
    %55 = vector.extract_strided_slice %54 {offsets = [0, 0], sizes = [16, 8], strides = [1, 1]} : vector<16x32xf32> to vector<16x8xf32>
    %56 = vector.extract_strided_slice %54 {offsets = [0, 8], sizes = [16, 8], strides = [1, 1]} : vector<16x32xf32> to vector<16x8xf32>
    %57 = arith.addf %55, %56 : vector<16x8xf32>
    %58 = vector.extract_strided_slice %54 {offsets = [0, 16], sizes = [16, 8], strides = [1, 1]} : vector<16x32xf32> to vector<16x8xf32>
    %59 = arith.addf %57, %58 : vector<16x8xf32>
    %60 = vector.extract_strided_slice %54 {offsets = [0, 24], sizes = [16, 8], strides = [1, 1]} : vector<16x32xf32> to vector<16x8xf32>
    %61 = arith.addf %59, %60 : vector<16x8xf32>
    %cst_22 = arith.constant 1.000000e+00 : f32
    %62 = vector.broadcast %cst_22 : f32 to vector<16x8xf32>
    %63 = arith.divf %62, %61 : vector<16x8xf32>
    %64 = tpu.concatenate %63, %63, %63, %63 in 1 : vector<16x8xf32>, vector<16x8xf32>, vector<16x8xf32>, vector<16x8xf32> -> vector<16x32xf32>
    %65 = arith.mulf %54, %64 : vector<16x32xf32>
    %c0_23 = arith.constant 0 : index
    %c0_24 = arith.constant 0 : index
    %66 = vector.load %arg0[%c0_23, %c0_24] : memref<4x16xf32, #tpu.memory_space<vmem>>, vector<4x16xf32>
    %cst_25 = arith.constant dense<0.000000e+00> : vector<4x32xf32>
    %67 = tpu.matmul %66, %65, %cst_25 {dimension_numbers = #tpu.dot_dimension_numbers<[1], [0], [0], [1], [0, 0, 1, 1], [], []>} : vector<4x16xf32>, vector<16x32xf32>, vector<4x32xf32> -> vector<4x32xf32>
    %c0_26 = arith.constant 0 : index
    %c0_27 = arith.constant 0 : index
    %68 = vector.load %arg8[%c0_26, %c0_27] : memref<32x128xf32, #tpu.memory_space<vmem>>, vector<32x128xf32>
    %cst_28 = arith.constant dense<0.000000e+00> : vector<4x128xf32>
    %69 = tpu.matmul %67, %68, %cst_28 {dimension_numbers = #tpu.dot_dimension_numbers<[1], [0], [0], [1], [0, 0, 1, 1], [], []>} : vector<4x32xf32>, vector<32x128xf32>, vector<4x128xf32> -> vector<4x128xf32>
    %c0_29 = arith.constant 0 : index
    %c0_30 = arith.constant 0 : index
    %70 = vector.load %arg9[%c0_29, %c0_30] : memref<1x128xf32, #tpu.memory_space<vmem>>, vector<1x128xf32>
    %71 = vector.broadcast %70 : vector<1x128xf32> to vector<4x128xf32>
    %72 = arith.addf %69, %71 : vector<4x128xf32>
    %cst_31 = arith.constant 0.000000e+00 : f32
    %73 = vector.broadcast %cst_31 : f32 to vector<4x128xf32>
    %74 = arith.maximumf %72, %73 : vector<4x128xf32>
    %c0_32 = arith.constant 0 : index
    %c0_33 = arith.constant 0 : index
    %75 = vector.load %arg10[%c0_32, %c0_33] : memref<128x16xf32, #tpu.memory_space<vmem>>, vector<128x16xf32>
    %cst_34 = arith.constant dense<0.000000e+00> : vector<4x16xf32>
    %76 = tpu.matmul %74, %75, %cst_34 {dimension_numbers = #tpu.dot_dimension_numbers<[1], [0], [0], [1], [0, 0, 1, 1], [], []>} : vector<4x128xf32>, vector<128x16xf32>, vector<4x16xf32> -> vector<4x16xf32>
    %c0_35 = arith.constant 0 : index
    %c0_36 = arith.constant 0 : index
    %77 = vector.load %arg11[%c0_35, %c0_36] : memref<1x16xf32, #tpu.memory_space<vmem>>, vector<1x16xf32>
    %78 = vector.broadcast %77 : vector<1x16xf32> to vector<4x16xf32>
    %79 = arith.addf %76, %78 : vector<4x16xf32>
    %c0_37 = arith.constant 0 : index
    %c0_38 = arith.constant 0 : index
    %80 = vector.load %arg12[%c0_37, %c0_38] : memref<4x16xf32, #tpu.memory_space<vmem>>, vector<4x16xf32>
    tpu.vector_store %arg12[%c0_37, %c0_38], %79 {strides = array<i32>} : memref<4x16xf32, #tpu.memory_space<vmem>>, vector<4x16xf32>,
    return
  }
}

</mosaic_0001>

<llo_original>
// kernel: tpu_custom_call.1
$region0: #{tpu_custom_call.1}
  #allocation0 [shape = 'u32[]', space=smem, size = 0x4, offset = 0x4, fixed_abs, tag = 'smem constant byte address 0x4 - core index']
  #allocation1 [shape = 'u32[144,128]{1,0:T(1,128)}', space=vmem, size = 0x12000, scoped, tag = 'internal scratch']
  #allocation2 [shape = 'f32[1]{0:T(128)S(6)}', space=smem, size = 0x200, scoped, tag = 'scoped memory for tpu_custom_call.1']
  %s0 = inlined_call_operand.vmem [shape: f32[4,16], index: 0, kind: input, shape index: {}]
  %s1 = inlined_call_operand.vmem [shape: f32[16,32], index: 1, kind: input, shape index: {}]
  %s2 = inlined_call_operand.vmem [shape: f32[32,8], index: 2, kind: input, shape index: {}]
  %s3 = inlined_call_operand.vmem [shape: f32[32,96], index: 3, kind: input, shape index: {}]
  %s4 = inlined_call_operand.vmem [shape: f32[1,96], index: 4, kind: input, shape index: {}]
  %s5 = inlined_call_operand.vmem [shape: f32[1,32], index: 5, kind: input, shape index: {}]
  %s6 = inlined_call_operand.vmem [shape: f32[16,32], index: 6, kind: input, shape index: {}]
  %s7 = inlined_call_operand.<no memory space> [shape: f32[1], index: 7, kind: input, shape index: {}]
  %s8 = inlined_call_operand.vmem [shape: f32[32,128], index: 8, kind: input, shape index: {}]
  %s9 = inlined_call_operand.vmem [shape: f32[1,128], index: 9, kind: input, shape index: {}]
  %s10 = inlined_call_operand.vmem [shape: f32[128,16], index: 10, kind: input, shape index: {}]
  %s11 = inlined_call_operand.vmem [shape: f32[1,16], index: 11, kind: input, shape index: {}]
  %s12 = inlined_call_operand.hbm [shape: f32[4,16], index: 12, kind: output, shape index: {}]
  %s13 = sld [smem:[#allocation0]]
  $region58: #{tpu_custom_call.1} parent=0
    _
  %s15 = ssub.s32 1, %s13
  %s16 = scalar_select 0, %s15, %s13
  %17 = sst [smem:[#allocation2]] %s7
  $region1: #{tpu_custom_call.1} parent=0
    #allocation3 [shape = 'u8[2048]{0}', space=vmem, size = 0x800, scoped, tag = 'output window, operand 0, single buffered']
    #allocation4 [shape = 's32[1]{0}', space=sflag, size = 0x4, scoped, tag = 'scoped memory for tpu_custom_call.1']
    %18 = vsyncpa [#allocation4], 0
    // Predicated region
    $region2: #{tpu_custom_call.1} parent=1 // pred_check
      _
    $region3: #{tpu_custom_call.1} parent=1 // pred_check_branch
      %20 = sbr.rel (0) target = $region5
    $region4: #{tpu_custom_call.1} parent=1 // pred_region
      _
    $region5: #{tpu_custom_call.1} parent=1 // pred_fallthru
      _
    // Predicated region
    $region6: #{tpu_custom_call.1} parent=1 // pred_check
      _
    $region7: #{tpu_custom_call.1} parent=1 // pred_check_branch
      %22 = sbr.rel (0) target = $region9
    $region8: #{tpu_custom_call.1} parent=1 // pred_region
      _
    $region9: #{tpu_custom_call.1} parent=1 // pred_fallthru
      _
    // Predicated region
    $region10: #{tpu_custom_call.1} parent=1 // pred_check
      _
    $region11: #{tpu_custom_call.1} parent=1 // pred_check_branch
      %24 = sbr.rel (0) target = $region13
    $region12: #{tpu_custom_call.1} parent=1 // pred_region
      _
    $region13: #{tpu_custom_call.1} parent=1 // pred_fallthru
      _
    // Predicated region
    $region14: #{tpu_custom_call.1} parent=1 // pred_check
      _
    $region15: #{tpu_custom_call.1} parent=1 // pred_check_branch
      %26 = sbr.rel (0) target = $region17
    $region16: #{tpu_custom_call.1} parent=1 // pred_region
      _
    $region17: #{tpu_custom_call.1} parent=1 // pred_fallthru
      _
    // Predicated region
    $region18: #{tpu_custom_call.1} parent=1 // pred_check
      _
    $region19: #{tpu_custom_call.1} parent=1 // pred_check_branch
      %28 = sbr.rel (0) target = $region21
    $region20: #{tpu_custom_call.1} parent=1 // pred_region
      _
    $region21: #{tpu_custom_call.1} parent=1 // pred_fallthru
      _
    // Predicated region
    $region22: #{tpu_custom_call.1} parent=1 // pred_check
      _
    $region23: #{tpu_custom_call.1} parent=1 // pred_check_branch
      %30 = sbr.rel (0) target = $region25
    $region24: #{tpu_custom_call.1} parent=1 // pred_region
      _
    $region25: #{tpu_custom_call.1} parent=1 // pred_fallthru
      _
    // Predicated region
    $region26: #{tpu_custom_call.1} parent=1 // pred_check
      _
    $region27: #{tpu_custom_call.1} parent=1 // pred_check_branch
      %32 = sbr.rel (0) target = $region29
    $region28: #{tpu_custom_call.1} parent=1 // pred_region
      _
    $region29: #{tpu_custom_call.1} parent=1 // pred_fallthru
      _
    // Predicated region
    $region30: #{tpu_custom_call.1} parent=1 // pred_check
      _
    $region31: #{tpu_custom_call.1} parent=1 // pred_check_branch
      %34 = sbr.rel (0) target = $region33
    $region32: #{tpu_custom_call.1} parent=1 // pred_region
      _
    $region33: #{tpu_custom_call.1} parent=1 // pred_fallthru
      _
    // Predicated region
    $region34: #{tpu_custom_call.1} parent=1 // pred_check
      _
    $region35: #{tpu_custom_call.1} parent=1 // pred_check_branch
      %36 = sbr.rel (0) target = $region37
    $region36: #{tpu_custom_call.1} parent=1 // pred_region
      _
    $region37: #{tpu_custom_call.1} parent=1 // pred_fallthru
      _
    // Predicated region
    $region38: #{tpu_custom_call.1} parent=1 // pred_check
      _
    $region39: #{tpu_custom_call.1} parent=1 // pred_check_branch
      %38 = sbr.rel (0) target = $region41
    $region40: #{tpu_custom_call.1} parent=1 // pred_region
      _
    $region41: #{tpu_custom_call.1} parent=1 // pred_fallthru
      _
    // Predicated region
    $region42: #{tpu_custom_call.1} parent=1 // pred_check
      _
    $region43: #{tpu_custom_call.1} parent=1 // pred_check_branch
      %40 = sbr.rel (0) target = $region45
    $region44: #{tpu_custom_call.1} parent=1 // pred_region
      _
    $region45: #{tpu_custom_call.1} parent=1 // pred_fallthru
      _
    // Predicated region
    $region46: #{tpu_custom_call.1} parent=1 // pred_check
      _
    $region47: #{tpu_custom_call.1} parent=1 // pred_check_branch
      %42 = sbr.rel (0) target = $region49
    $region48: #{tpu_custom_call.1} parent=1 // pred_region
      _
    $region49: #{tpu_custom_call.1} parent=1 // pred_fallthru
      _
    %v43 = vld [vmem:[%s1] sm:$0xff]
    %v44 = vld [vmem:[%s1 + $0x8] sm:$0xff]
    %v45 = vld [vmem:[%s3] sm:$0xff]
    %v46 = vld [vmem:[%s3 + $0x8] sm:$0xff]
    %v47 = vld [vmem:[%s3 + $0x10] sm:$0xff]
    %v48 = vld [vmem:[%s3 + $0x18] sm:$0xff]
    %v49 = vld [vmem:[%s4] sm:$0x1]
    %v51 = vlaneseq
    %v52 = vshrl.u32 %v51, 7
    %v53 = vsub.s32 0, %v52
    %v54 = vrot.slane %v49, %v53
    %vm56 = vcmask 261120
    %v58 = vsel %vm56, %v43, 0
    %v61 = vsel %vm56, %v44, 0
    %63 = vmatprep.subr.mxu0 0.0
    %64 = vmatpush1.msra.mxu0 %v45
    %65 = vmatprep.subr.mxu0 0.0
    %66 = vmatpush1.msra.mxu0 %v46
    %67 = vmatprep.subr.mxu0 0.0
    %68 = vmatpush1.msra.mxu0 %v47
    %69 = vmatprep.subr.mxu0 0.0
    %70 = vmatpush1.msra.mxu0 %v48
    %71 = vmatprep.subr.mxu0 0.0
    %72 = vmatpush1.msra.mxu0 0.0
    %73 = vmatprep.subr.mxu0 0.0
    %74 = vmatpush1.msra.mxu0 0.0
    %75 = vmatprep.subr.mxu0 0.0
    %76 = vmatpush1.msra.mxu0 0.0
    %77 = vmatprep.subr.mxu0 0.0
    %78 = vmatpush1.msra.mxu0 0.0
    %79 = vmatprep.subr.mxu0 0.0
    %80 = vmatpush1.msra.mxu0 0.0
    %81 = vmatprep.subr.mxu0 0.0
    %82 = vmatpush1.msra.mxu0 0.0
    %83 = vmatprep.subr.mxu0 0.0
    %84 = vmatpush1.msra.mxu0 0.0
    %85 = vmatprep.subr.mxu0 0.0
    %86 = vmatpush1.msra.mxu0 0.0
    %87 = vmatprep.subr.mxu0 0.0
    %88 = vmatpush1.msra.mxu0 0.0
    %89 = vmatprep.subr.mxu0 0.0
    %90 = vmatpush1.msra.mxu0 0.0
    %91 = vmatprep.subr.mxu0 0.0
    %92 = vmatpush1.msra.mxu0 0.0
    %93 = vmatprep.subr.mxu0 0.0
    %94 = vmatpush1.msra.mxu0 0.0
    %95 = vmatprep.subr.mxu0 0.0
    %96 = vmatpush1.msra.mxu0 0.0
    %97 = vmatprep.subr.mxu0 0.0
    %98 = vmatpush1.msra.mxu0 0.0
    %99 = vmatprep.subr.mxu0 0.0
    %100 = vmatpush1.msra.mxu0 0.0
    %101 = vmatprep.subr.mxu0 0.0
    %102 = vmatpush1.msra.mxu0 0.0
    %103 = vmatprep.subr.mxu0 0.0
    %104 = vmatpush1.msra.mxu0 0.0
    %105 = vmatprep.subr.mxu0 0.0
    %106 = vmatpush1.msra.mxu0 0.0
    %107 = vmatprep.subr.mxu0 0.0
    %108 = vmatpush1.msra.mxu0 0.0
    %109 = vmatprep.subr.mxu0 0.0
    %110 = vmatpush1.msra.mxu0 0.0
    %111 = vmatprep.subr.mxu0 0.0
    %112 = vmatpush1.msra.mxu0 0.0
    %113 = vmatprep.subr.mxu0 0.0
    %114 = vmatpush1.msra.mxu0 0.0
    %115 = vmatprep.subr.mxu0 0.0
    %116 = vmatpush1.msra.mxu0 0.0
    %117 = vmatprep.subr.mxu0 0.0
    %118 = vmatpush1.msra.mxu0 0.0
    %119 = vmatprep.subr.mxu0 0.0
    %120 = vmatpush1.msra.mxu0 0.0
    %121 = vmatprep.subr.mxu0 0.0
    %122 = vmatpush1.msra.mxu0 0.0
    %123 = vmatprep.subr.mxu0 0.0
    %124 = vmatpush1.msra.mxu0 0.0
    %125 = vmatprep.subr.mxu0 0.0
    %126 = vmatpush1.msra.mxu0 0.0
    %127 = vmatprep.mubr.f32.mxu0 0.0
    %128 = vmatmul.mubr.f32.gmra.mrb[0].mxu0 %v58
    %v129 = vpop.f32.mrb[0].mxu0
    %v130 = vadd.f32 %v54, %v129
    %v131 = vpop.f32.mrb[0].mxu0
    %132 = vmatprep.mubr.f32.mxu0 0.0
    %133 = vmatmul.mubr.f32.gmra.mrb[0].mxu0 %v61
    %v134 = vpop.f32.mrb[0].mxu0
    %v135 = vadd.f32 %v54, %v134
    %v136 = vpop.f32.mrb[0].mxu0
    %137 = vdwg.mxu0
    %140 = vrot.lane.b32.xlu0 %v130, 96
    %v141 = vpop.permute.xlu0 %140
    %142 = vrot.lane.b32.xlu0 %v135, 96
    %v143 = vpop.permute.xlu0 %142
    %v144 = vsel %vm56, %v130, 0
    %v146 = vsel %vm56, %v135, 0
    %v148 = vsel %vm56, %v141, 0
    %v150 = vsel %vm56, %v143, 0
    %152 = vmatprep.subr.mxu0 0.0
    %153 = vmatpush1.xpose.msra.mxu0 %v148
    %154 = vmatprep.subr.mxu0 0.0
    %155 = vmatpush1.xpose.msra.mxu0 %v150
    %156 = vmatprep.subr.mxu0 0.0
    %157 = vmatpush1.xpose.msra.mxu0 0.0
    %158 = vmatprep.subr.mxu0 0.0
    %159 = vmatpush1.xpose.msra.mxu0 0.0
    %160 = vmatprep.subr.mxu0 0.0
    %161 = vmatpush1.xpose.msra.mxu0 0.0
    %162 = vmatprep.subr.mxu0 0.0
    %163 = vmatpush1.xpose.msra.mxu0 0.0
    %164 = vmatprep.subr.mxu0 0.0
    %165 = vmatpush1.xpose.msra.mxu0 0.0
    %166 = vmatprep.subr.mxu0 0.0
    %167 = vmatpush1.xpose.msra.mxu0 0.0
    %168 = vmatprep.subr.mxu0 0.0
    %169 = vmatpush1.xpose.msra.mxu0 0.0
    %170 = vmatprep.subr.mxu0 0.0
    %171 = vmatpush1.xpose.msra.mxu0 0.0
    %172 = vmatprep.subr.mxu0 0.0
    %173 = vmatpush1.xpose.msra.mxu0 0.0
    %174 = vmatprep.subr.mxu0 0.0
    %175 = vmatpush1.xpose.msra.mxu0 0.0
    %176 = vmatprep.subr.mxu0 0.0
    %177 = vmatpush1.xpose.msra.mxu0 0.0
    %178 = vmatprep.subr.mxu0 0.0
    %179 = vmatpush1.xpose.msra.mxu0 0.0
    %180 = vmatprep.subr.mxu0 0.0
    %181 = vmatpush1.xpose.msra.mxu0 0.0
    %182 = vmatprep.subr.mxu0 0.0
    %183 = vmatpush1.xpose.msra.mxu0 0.0
    %184 = vmatprep.subr.mxu0 0.0
    %185 = vmatpush1.xpose.msra.mxu0 0.0
    %186 = vmatprep.subr.mxu0 0.0
    %187 = vmatpush1.xpose.msra.mxu0 0.0
    %188 = vmatprep.subr.mxu0 0.0
    %189 = vmatpush1.xpose.msra.mxu0 0.0
    %190 = vmatprep.subr.mxu0 0.0
    %191 = vmatpush1.xpose.msra.mxu0 0.0
    %192 = vmatprep.subr.mxu0 0.0
    %193 = vmatpush1.xpose.msra.mxu0 0.0
    %194 = vmatprep.subr.mxu0 0.0
    %195 = vmatpush1.xpose.msra.mxu0 0.0
    %196 = vmatprep.subr.mxu0 0.0
    %197 = vmatpush1.xpose.msra.mxu0 0.0
    %198 = vmatprep.subr.mxu0 0.0
    %199 = vmatpush1.xpose.msra.mxu0 0.0
    %200 = vmatprep.subr.mxu0 0.0
    %201 = vmatpush1.xpose.msra.mxu0 0.0
    %202 = vmatprep.subr.mxu0 0.0
    %203 = vmatpush1.xpose.msra.mxu0 0.0
    %204 = vmatprep.subr.mxu0 0.0
    %205 = vmatpush1.xpose.msra.mxu0 0.0
    %206 = vmatprep.subr.mxu0 0.0
    %207 = vmatpush1.xpose.msra.mxu0 0.0
    %208 = vmatprep.subr.mxu0 0.0
    %209 = vmatpush1.xpose.msra.mxu0 0.0
    %210 = vmatprep.subr.mxu0 0.0
    %211 = vmatpush1.xpose.msra.mxu0 0.0
    %212 = vmatprep.subr.mxu0 0.0
    %213 = vmatpush1.xpose.msra.mxu0 0.0
    %214 = vmatprep.subr.mxu0 0.0
    %215 = vmatpush1.xpose.msra.mxu0 0.0
    %216 = vmatprep.mubr.f32.mxu0 0.0
    %217 = vmatmul.mubr.f32.gmra.mrb[0].mxu0 %v144
    %v218 = vpop.f32.mrb[0].mxu0
    %v219 = vadd.f32 0.0, %v218
    %v220 = vpop.f32.mrb[0].mxu0
    %221 = vmatprep.mubr.f32.mxu0 0.0
    %222 = vmatmul.mubr.f32.gmra.mrb[0].mxu0 %v146
    %v223 = vpop.f32.mrb[0].mxu0
    %v224 = vadd.f32 0.0, %v223
    %v225 = vpop.f32.mrb[0].mxu0
    %226 = vdwg.mxu0
    %vm227 = vcmask 130048
    %v228 = vsel %vm227, %v219, -inf
    %229 = vmax.xlane.f32.xlu0 %v228
    %v230 = vpop.xlane.xlu0 %229
    %v231 = vsel %vm227, %v224, -inf
    %232 = vmax.xlane.f32.xlu0 %v231
    %v233 = vpop.xlane.xlu0 %232
    %v234 = vsub.f32 %v219, %v230
    %v235 = vsub.f32 %v224, %v233
    %v236 = vmul.f32 %v234, 1.442695
    %v237 = vpow.pop %v236
    %v238 = vmul.f32 %v235, 1.442695
    %v239 = vpow.pop %v238
    %v240 = vsel %vm227, %v237, 0.0
    %241 = vadd.xlane.f32.xlu0 %v240
    %v242 = vpop.xlane.xlu0 %241
    %v243 = vsel %vm227, %v239, 0.0
    %244 = vadd.xlane.f32.xlu0 %v243
    %v245 = vpop.xlane.xlu0 %244
    %v246 = vrcp.pop %v242
    %v247 = vmul.f32 1.0, %v246
    %v248 = vrcp.pop %v245
    %v249 = vmul.f32 1.0, %v248
    %v250 = vmul.f32 %v237, %v247
    %v251 = vmul.f32 %v239, %v249
    %v252 = vld [vmem:[%s5] sm:$0x1]
    %v254 = vlaneseq
    %v255 = vshrl.u32 %v254, 7
    %v256 = vsub.s32 0, %v255
    %v257 = vrot.slane %v252, %v256
    %259 = vrot.lane.b32.xlu0 %v130, 64
    %v260 = vpop.permute.xlu0 %259
    %261 = vrot.lane.b32.xlu0 %v135, 64
    %v262 = vpop.permute.xlu0 %261
    %v266 = vsel %vm227, %v250, 0
    %v269 = vsel %vm227, %v251, 0
    %271 = vmatprep.subr.mxu0 0.0
    %272 = vmatpush1.msra.mxu0 %v260
    %273 = vmatprep.subr.mxu0 0.0
    %274 = vmatpush1.msra.mxu0 %v262
    %275 = vmatprep.subr.mxu0 0.0
    %276 = vmatpush1.msra.mxu0 0.0
    %277 = vmatprep.subr.mxu0 0.0
    %278 = vmatpush1.msra.mxu0 0.0
    %279 = vmatprep.subr.mxu0 0.0
    %280 = vmatpush1.msra.mxu0 0.0
    %281 = vmatprep.subr.mxu0 0.0
    %282 = vmatpush1.msra.mxu0 0.0
    %283 = vmatprep.subr.mxu0 0.0
    %284 = vmatpush1.msra.mxu0 0.0
    %285 = vmatprep.subr.mxu0 0.0
    %286 = vmatpush1.msra.mxu0 0.0
    %287 = vmatprep.subr.mxu0 0.0
    %288 = vmatpush1.msra.mxu0 0.0
    %289 = vmatprep.subr.mxu0 0.0
    %290 = vmatpush1.msra.mxu0 0.0
    %291 = vmatprep.subr.mxu0 0.0
    %292 = vmatpush1.msra.mxu0 0.0
    %293 = vmatprep.subr.mxu0 0.0
    %294 = vmatpush1.msra.mxu0 0.0
    %295 = vmatprep.subr.mxu0 0.0
    %296 = vmatpush1.msra.mxu0 0.0
    %297 = vmatprep.subr.mxu0 0.0
    %298 = vmatpush1.msra.mxu0 0.0
    %299 = vmatprep.subr.mxu0 0.0
    %300 = vmatpush1.msra.mxu0 0.0
    %301 = vmatprep.subr.mxu0 0.0
    %302 = vmatpush1.msra.mxu0 0.0
    %303 = vmatprep.subr.mxu0 0.0
    %304 = vmatpush1.msra.mxu0 0.0
    %305 = vmatprep.subr.mxu0 0.0
    %306 = vmatpush1.msra.mxu0 0.0
    %307 = vmatprep.subr.mxu0 0.0
    %308 = vmatpush1.msra.mxu0 0.0
    %309 = vmatprep.subr.mxu0 0.0
    %310 = vmatpush1.msra.mxu0 0.0
    %311 = vmatprep.subr.mxu0 0.0
    %312 = vmatpush1.msra.mxu0 0.0
    %313 = vmatprep.subr.mxu0 0.0
    %314 = vmatpush1.msra.mxu0 0.0
    %315 = vmatprep.subr.mxu0 0.0
    %316 = vmatpush1.msra.mxu0 0.0
    %317 = vmatprep.subr.mxu0 0.0
    %318 = vmatpush1.msra.mxu0 0.0
    %319 = vmatprep.subr.mxu0 0.0
    %320 = vmatpush1.msra.mxu0 0.0
    %321 = vmatprep.subr.mxu0 0.0
    %322 = vmatpush1.msra.mxu0 0.0
    %323 = vmatprep.subr.mxu0 0.0
    %324 = vmatpush1.msra.mxu0 0.0
    %325 = vmatprep.subr.mxu0 0.0
    %326 = vmatpush1.msra.mxu0 0.0
    %327 = vmatprep.subr.mxu0 0.0
    %328 = vmatpush1.msra.mxu0 0.0
    %329 = vmatprep.subr.mxu0 0.0
    %330 = vmatpush1.msra.mxu0 0.0
    %331 = vmatprep.subr.mxu0 0.0
    %332 = vmatpush1.msra.mxu0 0.0
    %333 = vmatprep.subr.mxu0 0.0
    %334 = vmatpush1.msra.mxu0 0.0
    %335 = vmatprep.mubr.f32.mxu0 0.0
    %336 = vmatmul.mubr.f32.gmra.mrb[0].mxu0 %v266
    %v337 = vpop.f32.mrb[0].mxu0
    %v338 = vadd.f32 %v257, %v337
    %v339 = vpop.f32.mrb[0].mxu0
    %340 = vmatprep.mubr.f32.mxu0 0.0
    %341 = vmatmul.mubr.f32.gmra.mrb[0].mxu0 %v269
    %v342 = vpop.f32.mrb[0].mxu0
    %v343 = vadd.f32 %v257, %v342
    %v344 = vpop.f32.mrb[0].mxu0
    %345 = vdwg.mxu0
    %v346 = vadd.f32 %v338, %v43
    %v347 = vadd.f32 %v343, %v44
    %v348 = vld [vmem:[%s2] sm:$0xff]
    %v349 = vld [vmem:[%s2 + $0x8] sm:$0xff]
    %v350 = vld [vmem:[%s2 + $0x10] sm:$0xff]
    %v351 = vld [vmem:[%s2 + $0x18] sm:$0xff]
    %v353 = vsel %vm56, %v346, 0
    %v356 = vsel %vm56, %v347, 0
    %358 = vmatprep.subr.mxu0 0.0
    %359 = vmatpush1.msra.mxu0 %v348
    %360 = vmatprep.subr.mxu0 0.0
    %361 = vmatpush1.msra.mxu0 %v349
    %362 = vmatprep.subr.mxu0 0.0
    %363 = vmatpush1.msra.mxu0 %v350
    %364 = vmatprep.subr.mxu0 0.0
    %365 = vmatpush1.msra.mxu0 %v351
    %366 = vmatprep.subr.mxu0 0.0
    %367 = vmatpush1.msra.mxu0 0.0
    %368 = vmatprep.subr.mxu0 0.0
    %369 = vmatpush1.msra.mxu0 0.0
    %370 = vmatprep.subr.mxu0 0.0
    %371 = vmatpush1.msra.mxu0 0.0
    %372 = vmatprep.subr.mxu0 0.0
    %373 = vmatpush1.msra.mxu0 0.0
    %374 = vmatprep.subr.mxu0 0.0
    %375 = vmatpush1.msra.mxu0 0.0
    %376 = vmatprep.subr.mxu0 0.0
    %377 = vmatpush1.msra.mxu0 0.0
    %378 = vmatprep.subr.mxu0 0.0
    %379 = vmatpush1.msra.mxu0 0.0
    %380 = vmatprep.subr.mxu0 0.0
    %381 = vmatpush1.msra.mxu0 0.0
    %382 = vmatprep.subr.mxu0 0.0
    %383 = vmatpush1.msra.mxu0 0.0
    %384 = vmatprep.subr.mxu0 0.0
    %385 = vmatpush1.msra.mxu0 0.0
    %386 = vmatprep.subr.mxu0 0.0
    %387 = vmatpush1.msra.mxu0 0.0
    %388 = vmatprep.subr.mxu0 0.0
    %389 = vmatpush1.msra.mxu0 0.0
    %390 = vmatprep.subr.mxu0 0.0
    %391 = vmatpush1.msra.mxu0 0.0
    %392 = vmatprep.subr.mxu0 0.0
    %393 = vmatpush1.msra.mxu0 0.0
    %394 = vmatprep.subr.mxu0 0.0
    %395 = vmatpush1.msra.mxu0 0.0
    %396 = vmatprep.subr.mxu0 0.0
    %397 = vmatpush1.msra.mxu0 0.0
    %398 = vmatprep.subr.mxu0 0.0
    %399 = vmatpush1.msra.mxu0 0.0
    %400 = vmatprep.subr.mxu0 0.0
    %401 = vmatpush1.msra.mxu0 0.0
    %402 = vmatprep.subr.mxu0 0.0
    %403 = vmatpush1.msra.mxu0 0.0
    %404 = vmatprep.subr.mxu0 0.0
    %405 = vmatpush1.msra.mxu0 0.0
    %406 = vmatprep.subr.mxu0 0.0
    %407 = vmatpush1.msra.mxu0 0.0
    %408 = vmatprep.subr.mxu0 0.0
    %409 = vmatpush1.msra.mxu0 0.0
    %410 = vmatprep.subr.mxu0 0.0
    %411 = vmatpush1.msra.mxu0 0.0
    %412 = vmatprep.subr.mxu0 0.0
    %413 = vmatpush1.msra.mxu0 0.0
    %414 = vmatprep.subr.mxu0 0.0
    %415 = vmatpush1.msra.mxu0 0.0
    %416 = vmatprep.subr.mxu0 0.0
    %417 = vmatpush1.msra.mxu0 0.0
    %418 = vmatprep.subr.mxu0 0.0
    %419 = vmatpush1.msra.mxu0 0.0
    %420 = vmatprep.subr.mxu0 0.0
    %421 = vmatpush1.msra.mxu0 0.0
    %422 = vmatprep.mubr.f32.mxu0 0.0
    %423 = vmatmul.mubr.f32.gmra.mrb[0].mxu0 %v353
    %v424 = vpop.f32.mrb[0].mxu0
    %v425 = vadd.f32 0.0, %v424
    %v426 = vpop.f32.mrb[0].mxu0
    %427 = vmatprep.mubr.f32.mxu0 0.0
    %428 = vmatmul.mubr.f32.gmra.mrb[0].mxu0 %v356
    %v429 = vpop.f32.mrb[0].mxu0
    %v430 = vadd.f32 0.0, %v429
    %v431 = vpop.f32.mrb[0].mxu0
    %432 = vdwg.mxu0
    %s433 = sld [smem:[#allocation2]]
    %v434 = vld [vmem:[%s6] sm:$0xff]
    %v435 = vld [vmem:[%s6 + $0x8] sm:$0xff]
    %v436 = vadd.f32 %v434, 1e-10
    %v437 = vadd.f32 %v435, 1e-10
    %v438 = vlog2.pop %v436
    %v439 = vmul.f32 %v438, 0.6931472
    %v440 = vlog2.pop %v437
    %v441 = vmul.f32 %v440, 0.6931472
    %v442 = vsub.f32 0.0, %v439
    %v443 = vsub.f32 0.0, %v441
    %v444 = vadd.f32 %v442, 1e-10
    %v445 = vadd.f32 %v443, 1e-10
    %v446 = vlog2.pop %v444
    %v447 = vmul.f32 %v446, 0.6931472
    %v448 = vlog2.pop %v445
    %v449 = vmul.f32 %v448, 0.6931472
    %v450 = vsub.f32 0.0, %v447
    %v451 = vsub.f32 0.0, %v449
    %454 = vrot.lane.b32.xlu0 %v425, 8
    %v455 = vpop.permute.xlu0 %454
    %456 = vrot.lane.b32.xlu0 %v430, 8
    %v457 = vpop.permute.xlu0 %456
    %460 = vrot.lane.b32.xlu0 %v425, 16
    %v461 = vpop.permute.xlu0 %460
    %462 = vrot.lane.b32.xlu0 %v430, 16
    %v463 = vpop.permute.xlu0 %462
    %466 = vrot.lane.b32.xlu0 %v425, 24
    %v467 = vpop.permute.xlu0 %466
    %468 = vrot.lane.b32.xlu0 %v430, 24
    %v469 = vpop.permute.xlu0 %468
    %vm472 = vcmask 64512
    %v473 = vsel %vm472, %v425, %v455
    %v474 = vsel %vm472, %v430, %v457
    %v475 = vsel %vm227, %v473, %v461
    %v476 = vsel %vm227, %v474, %v463
    %vm477 = vcmask 195584
    %v478 = vsel %vm477, %v475, %v467
    %v479 = vsel %vm477, %v476, %v469
    %v480 = vadd.f32 %v478, %v450
    %v481 = vadd.f32 %v479, %v451
    %v482 = vstv %s433
    %v483 = vmul.f32 %v480, %v482
    %v484 = vmul.f32 %v481, %v482
    %487 = vrot.lane.b32.xlu0 %v483, 120
    %v488 = vpop.permute.xlu0 %487
    %489 = vrot.lane.b32.xlu0 %v484, 120
    %v490 = vpop.permute.xlu0 %489
    %v493 = vmax.f32 %v483, %v488
    %v494 = vmax.f32 %v484, %v490
    %495 = vrot.lane.b32.xlu0 %v483, 112
    %v496 = vpop.permute.xlu0 %495
    %497 = vrot.lane.b32.xlu0 %v484, 112
    %v498 = vpop.permute.xlu0 %497
    %v501 = vmax.f32 %v493, %v496
    %v502 = vmax.f32 %v494, %v498
    %503 = vrot.lane.b32.xlu0 %v483, 104
    %v504 = vpop.permute.xlu0 %503
    %505 = vrot.lane.b32.xlu0 %v484, 104
    %v506 = vpop.permute.xlu0 %505
    %v509 = vmax.f32 %v501, %v504
    %v510 = vmax.f32 %v502, %v506
    %513 = vrot.lane.b32.xlu0 %v509, 8
    %v514 = vpop.permute.xlu0 %513
    %515 = vrot.lane.b32.xlu0 %v510, 8
    %v516 = vpop.permute.xlu0 %515
    %519 = vrot.lane.b32.xlu0 %v509, 16
    %v520 = vpop.permute.xlu0 %519
    %521 = vrot.lane.b32.xlu0 %v510, 16
    %v522 = vpop.permute.xlu0 %521
    %525 = vrot.lane.b32.xlu0 %v509, 24
    %v526 = vpop.permute.xlu0 %525
    %527 = vrot.lane.b32.xlu0 %v510, 24
    %v528 = vpop.permute.xlu0 %527
    %v531 = vsel %vm472, %v509, %v514
    %v532 = vsel %vm472, %v510, %v516
    %v533 = vsel %vm227, %v531, %v520
    %v534 = vsel %vm227, %v532, %v522
    %v535 = vsel %vm477, %v533, %v526
    %v536 = vsel %vm477, %v534, %v528
    %v537 = vsub.f32 %v483, %v535
    %v538 = vsub.f32 %v484, %v536
    %v539 = vmul.f32 %v537, 1.442695
    %v540 = vpow.pop %v539
    %v541 = vmul.f32 %v538, 1.442695
    %v542 = vpow.pop %v541
    %545 = vrot.lane.b32.xlu0 %v540, 120
    %v546 = vpop.permute.xlu0 %545
    %547 = vrot.lane.b32.xlu0 %v542, 120
    %v548 = vpop.permute.xlu0 %547
    %v551 = vadd.f32 %v540, %v546
    %v552 = vadd.f32 %v542, %v548
    %553 = vrot.lane.b32.xlu0 %v540, 112
    %v554 = vpop.permute.xlu0 %553
    %555 = vrot.lane.b32.xlu0 %v542, 112
    %v556 = vpop.permute.xlu0 %555
    %v559 = vadd.f32 %v551, %v554
    %v560 = vadd.f32 %v552, %v556
    %561 = vrot.lane.b32.xlu0 %v540, 104
    %v562 = vpop.permute.xlu0 %561
    %563 = vrot.lane.b32.xlu0 %v542, 104
    %v564 = vpop.permute.xlu0 %563
    %v567 = vadd.f32 %v559, %v562
    %v568 = vadd.f32 %v560, %v564
    %v569 = vrcp.pop %v567
    %v570 = vmul.f32 1.0, %v569
    %v571 = vrcp.pop %v568
    %v572 = vmul.f32 1.0, %v571
    %575 = vrot.lane.b32.xlu0 %v570, 8
    %v576 = vpop.permute.xlu0 %575
    %577 = vrot.lane.b32.xlu0 %v572, 8
    %v578 = vpop.permute.xlu0 %577
    %581 = vrot.lane.b32.xlu0 %v570, 16
    %v582 = vpop.permute.xlu0 %581
    %583 = vrot.lane.b32.xlu0 %v572, 16
    %v584 = vpop.permute.xlu0 %583
    %587 = vrot.lane.b32.xlu0 %v570, 24
    %v588 = vpop.permute.xlu0 %587
    %589 = vrot.lane.b32.xlu0 %v572, 24
    %v590 = vpop.permute.xlu0 %589
    %v593 = vsel %vm472, %v570, %v576
    %v594 = vsel %vm472, %v572, %v578
    %v595 = vsel %vm227, %v593, %v582
    %v596 = vsel %vm227, %v594, %v584
    %v597 = vsel %vm477, %v595, %v588
    %v598 = vsel %vm477, %v596, %v590
    %v599 = vmul.f32 %v540, %v597
    %v600 = vmul.f32 %v542, %v598
    %v601 = vld [vmem:[%s0] sm:$0xf]
    %v603 = vsel %vm227, %v601, 0
    %605 = vmatprep.subr.mxu0 0.0
    %606 = vmatpush1.msra.mxu0 %v599
    %607 = vmatprep.subr.mxu0 0.0
    %608 = vmatpush1.msra.mxu0 %v600
    %609 = vmatprep.subr.mxu0 0.0
    %610 = vmatpush1.msra.mxu0 0.0
    %611 = vmatprep.subr.mxu0 0.0
    %612 = vmatpush1.msra.mxu0 0.0
    %613 = vmatprep.subr.mxu0 0.0
    %614 = vmatpush1.msra.mxu0 0.0
    %615 = vmatprep.subr.mxu0 0.0
    %616 = vmatpush1.msra.mxu0 0.0
    %617 = vmatprep.subr.mxu0 0.0
    %618 = vmatpush1.msra.mxu0 0.0
    %619 = vmatprep.subr.mxu0 0.0
    %620 = vmatpush1.msra.mxu0 0.0
    %621 = vmatprep.subr.mxu0 0.0
    %622 = vmatpush1.msra.mxu0 0.0
    %623 = vmatprep.subr.mxu0 0.0
    %624 = vmatpush1.msra.mxu0 0.0
    %625 = vmatprep.subr.mxu0 0.0
    %626 = vmatpush1.msra.mxu0 0.0
    %627 = vmatprep.subr.mxu0 0.0
    %628 = vmatpush1.msra.mxu0 0.0
    %629 = vmatprep.subr.mxu0 0.0
    %630 = vmatpush1.msra.mxu0 0.0
    %631 = vmatprep.subr.mxu0 0.0
    %632 = vmatpush1.msra.mxu0 0.0
    %633 = vmatprep.subr.mxu0 0.0
    %634 = vmatpush1.msra.mxu0 0.0
    %635 = vmatprep.subr.mxu0 0.0
    %636 = vmatpush1.msra.mxu0 0.0
    %637 = vmatprep.subr.mxu0 0.0
    %638 = vmatpush1.msra.mxu0 0.0
    %639 = vmatprep.subr.mxu0 0.0
    %640 = vmatpush1.msra.mxu0 0.0
    %641 = vmatprep.subr.mxu0 0.0
    %642 = vmatpush1.msra.mxu0 0.0
    %643 = vmatprep.subr.mxu0 0.0
    %644 = vmatpush1.msra.mxu0 0.0
    %645 = vmatprep.subr.mxu0 0.0
    %646 = vmatpush1.msra.mxu0 0.0
    %647 = vmatprep.subr.mxu0 0.0
    %648 = vmatpush1.msra.mxu0 0.0
    %649 = vmatprep.subr.mxu0 0.0
    %650 = vmatpush1.msra.mxu0 0.0
    %651 = vmatprep.subr.mxu0 0.0
    %652 = vmatpush1.msra.mxu0 0.0
    %653 = vmatprep.subr.mxu0 0.0
    %654 = vmatpush1.msra.mxu0 0.0
    %655 = vmatprep.subr.mxu0 0.0
    %656 = vmatpush1.msra.mxu0 0.0
    %657 = vmatprep.subr.mxu0 0.0
    %658 = vmatpush1.msra.mxu0 0.0
    %659 = vmatprep.subr.mxu0 0.0
    %660 = vmatpush1.msra.mxu0 0.0
    %661 = vmatprep.subr.mxu0 0.0
    %662 = vmatpush1.msra.mxu0 0.0
    %663 = vmatprep.subr.mxu0 0.0
    %664 = vmatpush1.msra.mxu0 0.0
    %665 = vmatprep.subr.mxu0 0.0
    %666 = vmatpush1.msra.mxu0 0.0
    %667 = vmatprep.subr.mxu0 0.0
    %668 = vmatpush1.msra.mxu0 0.0
    %669 = vmatprep.mubr.f32.mxu0 0.0
    %670 = vmatmul.mubr.f32.gmra.mrb[0].mxu0 %v603
    %v671 = vpop.f32.mrb[0].mxu0
    %v672 = vadd.f32 0.0, %v671
    %v673 = vpop.f32.mrb[0].mxu0
    %674 = vdwg.mxu0
    %v675 = vld [vmem:[%s8] sm:$0xff]
    %v676 = vld [vmem:[%s8 + $0x8] sm:$0xff]
    %v677 = vld [vmem:[%s8 + $0x10] sm:$0xff]
    %v678 = vld [vmem:[%s8 + $0x18] sm:$0xff]
    %v679 = vld [vmem:[%s9] sm:$0x1]
    %v681 = vlaneseq
    %v682 = vshrl.u32 %v681, 7
    %v683 = vsub.s32 0, %v682
    %v684 = vrot.slane %v679, %v683
    %v687 = vsel %vm56, %v672, 0
    %689 = vmatprep.subr.mxu0 0.0
    %690 = vmatpush1.msra.mxu0 %v675
    %691 = vmatprep.subr.mxu0 0.0
    %692 = vmatpush1.msra.mxu0 %v676
    %693 = vmatprep.subr.mxu0 0.0
    %694 = vmatpush1.msra.mxu0 %v677
    %695 = vmatprep.subr.mxu0 0.0
    %696 = vmatpush1.msra.mxu0 %v678
    %697 = vmatprep.subr.mxu0 0.0
    %698 = vmatpush1.msra.mxu0 0.0
    %699 = vmatprep.subr.mxu0 0.0
    %700 = vmatpush1.msra.mxu0 0.0
    %701 = vmatprep.subr.mxu0 0.0
    %702 = vmatpush1.msra.mxu0 0.0
    %703 = vmatprep.subr.mxu0 0.0
    %704 = vmatpush1.msra.mxu0 0.0
    %705 = vmatprep.subr.mxu0 0.0
    %706 = vmatpush1.msra.mxu0 0.0
    %707 = vmatprep.subr.mxu0 0.0
    %708 = vmatpush1.msra.mxu0 0.0
    %709 = vmatprep.subr.mxu0 0.0
    %710 = vmatpush1.msra.mxu0 0.0
    %711 = vmatprep.subr.mxu0 0.0
    %712 = vmatpush1.msra.mxu0 0.0
    %713 = vmatprep.subr.mxu0 0.0
    %714 = vmatpush1.msra.mxu0 0.0
    %715 = vmatprep.subr.mxu0 0.0
    %716 = vmatpush1.msra.mxu0 0.0
    %717 = vmatprep.subr.mxu0 0.0
    %718 = vmatpush1.msra.mxu0 0.0
    %719 = vmatprep.subr.mxu0 0.0
    %720 = vmatpush1.msra.mxu0 0.0
    %721 = vmatprep.subr.mxu0 0.0
    %722 = vmatpush1.msra.mxu0 0.0
    %723 = vmatprep.subr.mxu0 0.0
    %724 = vmatpush1.msra.mxu0 0.0
    %725 = vmatprep.subr.mxu0 0.0
    %726 = vmatpush1.msra.mxu0 0.0
    %727 = vmatprep.subr.mxu0 0.0
    %728 = vmatpush1.msra.mxu0 0.0
    %729 = vmatprep.subr.mxu0 0.0
    %730 = vmatpush1.msra.mxu0 0.0
    %731 = vmatprep.subr.mxu0 0.0
    %732 = vmatpush1.msra.mxu0 0.0
    %733 = vmatprep.subr.mxu0 0.0
    %734 = vmatpush1.msra.mxu0 0.0
    %735 = vmatprep.subr.mxu0 0.0
    %736 = vmatpush1.msra.mxu0 0.0
    %737 = vmatprep.subr.mxu0 0.0
    %738 = vmatpush1.msra.mxu0 0.0
    %739 = vmatprep.subr.mxu0 0.0
    %740 = vmatpush1.msra.mxu0 0.0
    %741 = vmatprep.subr.mxu0 0.0
    %742 = vmatpush1.msra.mxu0 0.0
    %743 = vmatprep.subr.mxu0 0.0
    %744 = vmatpush1.msra.mxu0 0.0
    %745 = vmatprep.subr.mxu0 0.0
    %746 = vmatpush1.msra.mxu0 0.0
    %747 = vmatprep.subr.mxu0 0.0
    %748 = vmatpush1.msra.mxu0 0.0
    %749 = vmatprep.subr.mxu0 0.0
    %750 = vmatpush1.msra.mxu0 0.0
    %751 = vmatprep.subr.mxu0 0.0
    %752 = vmatpush1.msra.mxu0 0.0
    %753 = vmatprep.mubr.f32.mxu0 0.0
    %754 = vmatmul.mubr.f32.gmra.mrb[0].mxu0 %v687
    %v755 = vpop.f32.mrb[0].mxu0
    %v756 = vadd.f32 %v684, %v755
    %v757 = vpop.f32.mrb[0].mxu0
    %758 = vdwg.mxu0
    %v759 = vmax.f32 %v756, 0.0
    %v760 = vld [vmem:[%s10] sm:$0xff]
    %v761 = vld [vmem:[%s10 + $0x8] sm:$0xff]
    %v762 = vld [vmem:[%s10 + $0x10] sm:$0xff]
    %v763 = vld [vmem:[%s10 + $0x18] sm:$0xff]
    %v764 = vld [vmem:[%s10 + $0x20] sm:$0xff]
    %v765 = vld [vmem:[%s10 + $0x28] sm:$0xff]
    %v766 = vld [vmem:[%s10 + $0x30] sm:$0xff]
    %v767 = vld [vmem:[%s10 + $0x38] sm:$0xff]
    %v768 = vld [vmem:[%s10 + $0x40] sm:$0xff]
    %v769 = vld [vmem:[%s10 + $0x48] sm:$0xff]
    %v770 = vld [vmem:[%s10 + $0x50] sm:$0xff]
    %v771 = vld [vmem:[%s10 + $0x58] sm:$0xff]
    %v772 = vld [vmem:[%s10 + $0x60] sm:$0xff]
    %v773 = vld [vmem:[%s10 + $0x68] sm:$0xff]
    %v774 = vld [vmem:[%s10 + $0x70] sm:$0xff]
    %v775 = vld [vmem:[%s10 + $0x78] sm:$0xff]
    %v776 = vld [vmem:[%s11] sm:$0x1]
    %v778 = vlaneseq
    %v779 = vshrl.u32 %v778, 7
    %v780 = vsub.s32 0, %v779
    %v781 = vrot.slane %v776, %v780
    %783 = vmatprep.subr.mxu0 0.0
    %784 = vmatpush1.msra.mxu0 %v760
    %785 = vmatprep.subr.mxu0 0.0
    %786 = vmatpush1.msra.mxu0 %v761
    %787 = vmatprep.subr.mxu0 0.0
    %788 = vmatpush1.msra.mxu0 %v762
    %789 = vmatprep.subr.mxu0 0.0
    %790 = vmatpush1.msra.mxu0 %v763
    %791 = vmatprep.subr.mxu0 0.0
    %792 = vmatpush1.msra.mxu0 %v764
    %793 = vmatprep.subr.mxu0 0.0
    %794 = vmatpush1.msra.mxu0 %v765
    %795 = vmatprep.subr.mxu0 0.0
    %796 = vmatpush1.msra.mxu0 %v766
    %797 = vmatprep.subr.mxu0 0.0
    %798 = vmatpush1.msra.mxu0 %v767
    %799 = vmatprep.subr.mxu0 0.0
    %800 = vmatpush1.msra.mxu0 %v768
    %801 = vmatprep.subr.mxu0 0.0
    %802 = vmatpush1.msra.mxu0 %v769
    %803 = vmatprep.subr.mxu0 0.0
    %804 = vmatpush1.msra.mxu0 %v770
    %805 = vmatprep.subr.mxu0 0.0
    %806 = vmatpush1.msra.mxu0 %v771
    %807 = vmatprep.subr.mxu0 0.0
    %808 = vmatpush1.msra.mxu0 %v772
    %809 = vmatprep.subr.mxu0 0.0
    %810 = vmatpush1.msra.mxu0 %v773
    %811 = vmatprep.subr.mxu0 0.0
    %812 = vmatpush1.msra.mxu0 %v774
    %813 = vmatprep.subr.mxu0 0.0
    %814 = vmatpush1.msra.mxu0 %v775
    %815 = vmatprep.subr.mxu0 0.0
    %816 = vmatpush1.msra.mxu0 0.0
    %817 = vmatprep.subr.mxu0 0.0
    %818 = vmatpush1.msra.mxu0 0.0
    %819 = vmatprep.subr.mxu0 0.0
    %820 = vmatpush1.msra.mxu0 0.0
    %821 = vmatprep.subr.mxu0 0.0
    %822 = vmatpush1.msra.mxu0 0.0
    %823 = vmatprep.subr.mxu0 0.0
    %824 = vmatpush1.msra.mxu0 0.0
    %825 = vmatprep.subr.mxu0 0.0
    %826 = vmatpush1.msra.mxu0 0.0
    %827 = vmatprep.subr.mxu0 0.0
    %828 = vmatpush1.msra.mxu0 0.0
    %829 = vmatprep.subr.mxu0 0.0
    %830 = vmatpush1.msra.mxu0 0.0
    %831 = vmatprep.subr.mxu0 0.0
    %832 = vmatpush1.msra.mxu0 0.0
    %833 = vmatprep.subr.mxu0 0.0
    %834 = vmatpush1.msra.mxu0 0.0
    %835 = vmatprep.subr.mxu0 0.0
    %836 = vmatpush1.msra.mxu0 0.0
    %837 = vmatprep.subr.mxu0 0.0
    %838 = vmatpush1.msra.mxu0 0.0
    %839 = vmatprep.subr.mxu0 0.0
    %840 = vmatpush1.msra.mxu0 0.0
    %841 = vmatprep.subr.mxu0 0.0
    %842 = vmatpush1.msra.mxu0 0.0
    %843 = vmatprep.subr.mxu0 0.0
    %844 = vmatpush1.msra.mxu0 0.0
    %845 = vmatprep.subr.mxu0 0.0
    %846 = vmatpush1.msra.mxu0 0.0
    %847 = vmatprep.mubr.f32.mxu0 0.0
    %848 = vmatmul.mubr.f32.gmra.mrb[0].mxu0 %v759
    %v849 = vpop.f32.mrb[0].mxu0
    %v850 = vadd.f32 %v781, %v849
    %v851 = vpop.f32.mrb[0].mxu0
    %852 = vdwg.mxu0
    %vm853 = vcmask 125952
    %854 = vst.msk [vmem:[#allocation3] sm:$0xf] %vm853, %v850
    // Predicated region
    $region50: #{tpu_custom_call.1} parent=1 // pred_check
      _
    $region51: #{tpu_custom_call.1} parent=1 // pred_check_branch
      %856 = sbr.rel (0) target = $region53
    $region52: #{tpu_custom_call.1} parent=1 // pred_region
      %s858 = ssub.s32 64, 64
      %859 = vsyncadd [#allocation4], %s858
      %s861 = sshll.u32 [#allocation3], 4
      %s862 = int_to_ptr.vmem [resolvable:$true] %s861
      %864 = dma.vmem_to_hbm [thread:$0]  %s862, 64, %s12, [#allocation4]
    $region53: #{tpu_custom_call.1} parent=1 // pred_fallthru
      _
    // Predicated region
    $region54: #{tpu_custom_call.1} parent=1 // pred_check
      _
    $region55: #{tpu_custom_call.1} parent=1 // pred_check_branch
      %866 = sbr.rel (0) target = $region57
    $region56: #{tpu_custom_call.1} parent=1 // pred_region
      %867 = dma.done [#allocation4], 64
    $region57: #{tpu_custom_call.1} parent=1 // pred_fallthru
      _
    %868 = vsyncpa [#allocation4], 1

</llo_original>
